<compile_context>
chip_gen: v5e
topology: v5e:2x2
jax: 0.10.0
libtpu: 0.0.40
codegen_flags: <defaults>
</compile_context>

<pallas_src>
import math

import jax
import jax.numpy as jnp
from jax.experimental import pallas as pl
from jax.experimental.pallas import tpu as pltpu


# ----------------------------------------------------------------------------
# Kernels: one grid step == one application of durationCellv3.forward
# ----------------------------------------------------------------------------
def _rnn_seq_kernel(x_ref, mask_ref, h0_ref, w_ref, b_ref,
                    out_x_ref, out_h_ref, h_sc, xh_sc):
    t = pl.program_id(0)

    @pl.when(t == 0)
    def _():
        h_sc[...] = h0_ref[...]           # load initial hidden state into VMEM carry

    x = x_ref[0]                          # (B, H) f32, streamed per step
    h = h_sc[...]                         # (B, H) f32, carried in VMEM across steps
    mask = mask_ref[0]                    # (B, 1) f32
    B, H = x.shape

    # Fused gate matmul: assemble [x, h] -> (B, 2H) in a small VMEM scratch and
    # hit the MXU once with bf16 operands / f32 accumulation.
    xh_sc[:, 0:H] = x
    xh_sc[:, H:2 * H] = h
    gates = jnp.dot(xh_sc[...].astype(jnp.bfloat16), w_ref[...],
                    preferred_element_type=jnp.float32) + b_ref[...]   # (B, H) f32
    h_new = jnp.tanh(gates)

    mask_b = jnp.broadcast_to(mask, (B, H))      # broadcast once, reuse for all blends
    # dropout(h_new) == h_new in eval mode
    out_x_ref[0] = x + (h_new - x) * mask_b
    h_sc[...] = h + (h_new - h) * mask_b

    @pl.when(t == pl.num_programs(0) - 1)
    def _():
        out_h_ref[...] = h_sc[...]        # single writeback of the final hidden state


def _lstm_seq_kernel(x_ref, mask_ref, hc0_ref, w_ref, b_ref,
                     out_x_ref, out_hc_ref, hc_sc, xh_sc):
    t = pl.program_id(0)

    @pl.when(t == 0)
    def _():
        hc_sc[...] = hc0_ref[...]         # packed (h, c) initial state into VMEM carry

    x = x_ref[0]                          # (B, H) f32
    h = hc_sc[0]                          # (B, H) f32
    c = hc_sc[1]                          # (B, H) f32
    mask = mask_ref[0]                    # (B, 1) f32
    B, H = x.shape

    # Fused gate matmul: [x, h] (B, 2H) @ [W_ih^T ; W_hh^T] (2H, 4H), bf16 on MXU.
    xh_sc[:, 0:H] = x
    xh_sc[:, H:2 * H] = h
    gates = jnp.dot(xh_sc[...].astype(jnp.bfloat16), w_ref[...],
                    preferred_element_type=jnp.float32) + b_ref[...]   # (B, 4H) f32

    # torch.nn.LSTMCell gate order: i, f, g, o
    i = jax.nn.sigmoid(gates[:, 0 * H:1 * H])
    f = jax.nn.sigmoid(gates[:, 1 * H:2 * H])
    g = jnp.tanh(gates[:, 2 * H:3 * H])
    o = jax.nn.sigmoid(gates[:, 3 * H:4 * H])

    c_new = f * c + i * g
    h_new = o * jnp.tanh(c_new)

    mask_b = jnp.broadcast_to(mask, (B, H))
    # dropout(h_new) == h_new in eval mode
    out_x_ref[0] = x + (h_new - x) * mask_b
    hc_sc[0] = h + (h_new - h) * mask_b
    hc_sc[1] = c + (c_new - c) * mask_b

    @pl.when(t == pl.num_programs(0) - 1)
    def _():
        out_hc_ref[...] = hc_sc[...]      # single packed writeback of final (h, c)


# ----------------------------------------------------------------------------
# One-time parameter prep (hoisted out of the per-step path)
# ----------------------------------------------------------------------------
def prepare_rnn_params(w_ih, w_hh, b_ih, b_hh):
    H = w_ih.shape[1]
    w = jnp.concatenate([w_ih.T, w_hh.T], axis=0).astype(jnp.bfloat16)   # (2H, H)
    b = (b_ih + b_hh).reshape(1, H).astype(jnp.float32)                  # (1, H)
    return w, b


def prepare_lstm_params(w_ih, w_hh, b_ih, b_hh):
    H = w_ih.shape[1]
    w = jnp.concatenate([w_ih.T, w_hh.T], axis=0).astype(jnp.bfloat16)   # (2H, 4H)
    b = (b_ih + b_hh).reshape(1, 4 * H).astype(jnp.float32)              # (1, 4H)
    return w, b


# ----------------------------------------------------------------------------
# Wrappers: fused-sequence kernels (T module.forward steps in ONE pallas_call)
# ----------------------------------------------------------------------------
@jax.jit
def duration_cell_v3_rnn_seq(xs, masks, h0, params):
    """Apply durationCellv3('rnn').forward over T steps, h carried in VMEM.

    xs: (T, B, H) f32; masks: (T, B) bool/float; h0: (B, H) f32.
    Returns (out_xs (T, B, H), h_T (B, H)).
    """
    w, b = params
    T, B, H = xs.shape
    masks3 = masks.astype(jnp.float32).reshape(T, B, 1)

    out_xs, out_h = pl.pallas_call(
        _rnn_seq_kernel,
        out_shape=(jax.ShapeDtypeStruct((T, B, H), jnp.float32),
                   jax.ShapeDtypeStruct((B, H), jnp.float32)),
        grid=(T,),
        in_specs=[
            pl.BlockSpec((1, B, H), lambda t: (t, 0, 0)),      # x_t   (streamed)
            pl.BlockSpec((1, B, 1), lambda t: (t, 0, 0)),      # mask_t (streamed)
            pl.BlockSpec((B, H), lambda t: (0, 0)),            # h0    (resident)
            pl.BlockSpec((2 * H, H), lambda t: (0, 0)),        # fused W (resident)
            pl.BlockSpec((1, H), lambda t: (0, 0)),            # bias  (resident)
        ],
        out_specs=(
            pl.BlockSpec((1, B, H), lambda t: (t, 0, 0)),      # out_x_t (streamed)
            pl.BlockSpec((B, H), lambda t: (0, 0)),            # final h (written once)
        ),
        scratch_shapes=[pltpu.VMEM((B, H), jnp.float32),       # carried h
                        pltpu.VMEM((B, 2 * H), jnp.float32)],  # [x, h] staging
        compiler_params=pltpu.CompilerParams(
            dimension_semantics=("arbitrary",)),               # time axis is sequential
    )(xs, masks3, h0, w, b)
    return out_xs, out_h


@jax.jit
def duration_cell_v3_lstm_seq(xs, masks, h0, c0, params):
    """Apply durationCellv3('lstm').forward over T steps, (h, c) carried in VMEM."""
    w, b = params
    T, B, H = xs.shape
    masks3 = masks.astype(jnp.float32).reshape(T, B, 1)
    hc0 = jnp.stack([h0, c0])                                  # (2, B, H) packed state

    out_xs, out_hc = pl.pallas_call(
        _lstm_seq_kernel,
        out_shape=(jax.ShapeDtypeStruct((T, B, H), jnp.float32),
                   jax.ShapeDtypeStruct((2, B, H), jnp.float32)),
        grid=(T,),
        in_specs=[
            pl.BlockSpec((1, B, H), lambda t: (t, 0, 0)),      # x_t   (streamed)
            pl.BlockSpec((1, B, 1), lambda t: (t, 0, 0)),      # mask_t (streamed)
            pl.BlockSpec((2, B, H), lambda t: (0, 0, 0)),      # (h0, c0) (resident)
            pl.BlockSpec((2 * H, 4 * H), lambda t: (0, 0)),    # fused W (resident)
            pl.BlockSpec((1, 4 * H), lambda t: (0, 0)),        # bias  (resident)
        ],
        out_specs=(
            pl.BlockSpec((1, B, H), lambda t: (t, 0, 0)),      # out_x_t (streamed)
            pl.BlockSpec((2, B, H), lambda t: (0, 0, 0)),      # final (h, c)
        ),
        scratch_shapes=[pltpu.VMEM((2, B, H), jnp.float32),    # carried (h, c)
                        pltpu.VMEM((B, 2 * H), jnp.float32)],  # [x, h] staging
        compiler_params=pltpu.CompilerParams(
            dimension_semantics=("arbitrary",)),
    )(xs, masks3, hc0, w, b)
    return out_xs, out_hc[0], out_hc[1]


# Single-step entry points (exact module.forward signature) == T == 1 case.
def duration_cell_v3_rnn(x, h, mask, params):
    out_xs, out_h = duration_cell_v3_rnn_seq(x[None], mask[None], h, params)
    return out_xs[0], out_h


def duration_cell_v3_lstm(x, h, c, mask, params):
    out_xs, out_h, out_c = duration_cell_v3_lstm_seq(x[None], mask[None], h, c, params)
    return out_xs[0], out_h, out_c


# ----------------------------------------------------------------------------
# Pure-JAX references (torch.nn.RNNCell / LSTMCell semantics).  With
# matmul_dtype=jnp.bfloat16 they mirror the kernel's bf16-operand matmul.
# ----------------------------------------------------------------------------
def _ref_rnn_step(x, h, mask, w_ih, w_hh, b_ih, b_hh, matmul_dtype=None):
    m = mask.astype(jnp.float32)[:, None]
    if matmul_dtype is None:
        pre = x @ w_ih.T + b_ih + h @ w_hh.T + b_hh
    else:
        xh = jnp.concatenate([x, h], axis=1).astype(matmul_dtype)
        w = jnp.concatenate([w_ih.T, w_hh.T], axis=0).astype(matmul_dtype)
        pre = jnp.dot(xh, w, preferred_element_type=jnp.float32) + (b_ih + b_hh)
    h_new = jnp.tanh(pre)
    return x * (1 - m) + h_new * m, h * (1 - m) + h_new * m


def _ref_lstm_step(x, h, c, mask, w_ih, w_hh, b_ih, b_hh, matmul_dtype=None):
    m = mask.astype(jnp.float32)[:, None]
    H = x.shape[1]
    if matmul_dtype is None:
        gates = x @ w_ih.T + b_ih + h @ w_hh.T + b_hh
    else:
        xh = jnp.concatenate([x, h], axis=1).astype(matmul_dtype)
        w = jnp.concatenate([w_ih.T, w_hh.T], axis=0).astype(matmul_dtype)
        gates = jnp.dot(xh, w, preferred_element_type=jnp.float32) + (b_ih + b_hh)
    i = jax.nn.sigmoid(gates[:, :H])
    f = jax.nn.sigmoid(gates[:, H:2 * H])
    g = jnp.tanh(gates[:, 2 * H:3 * H])
    o = jax.nn.sigmoid(gates[:, 3 * H:])
    c_new = f * c + i * g
    h_new = o * jnp.tanh(c_new)
    return (x * (1 - m) + h_new * m,
            h * (1 - m) + h_new * m,
            c * (1 - m) + c_new * m)


def _ref_rnn_seq(xs, masks, h0, w_ih, w_hh, b_ih, b_hh, matmul_dtype=None):
    h, outs = h0, []
    for t in range(xs.shape[0]):
        ox, h = _ref_rnn_step(xs[t], h, masks[t], w_ih, w_hh, b_ih, b_hh, matmul_dtype)
        outs.append(ox)
    return jnp.stack(outs), h


def _ref_lstm_seq(xs, masks, h0, c0, w_ih, w_hh, b_ih, b_hh, matmul_dtype=None):
    h, c, outs = h0, c0, []
    for t in range(xs.shape[0]):
        ox, h, c = _ref_lstm_step(xs[t], h, c, masks[t], w_ih, w_hh, b_ih, b_hh,
                                  matmul_dtype)
        outs.append(ox)
    return jnp.stack(outs), h, c


def _check(name, a, b, atol):
    err = float(jnp.max(jnp.abs(a - b)))
    assert jnp.allclose(a, b, atol=atol), f"{name}: max abs err {err:.3e} > {atol}"


# ----------------------------------------------------------------------------
# Main
# ----------------------------------------------------------------------------
if __name__ == "__main__":
    B, H, T = 8, 32, 8            # input_size == hidden_size (module asserts this)
    key = jax.random.PRNGKey(0)
    keys = jax.random.split(key, 12)

    xs = jax.random.normal(keys[0], (T, B, H), jnp.float32)
    h0 = jax.random.normal(keys[1], (B, H), jnp.float32)
    c0 = jax.random.normal(keys[2], (B, H), jnp.float32)
    masks = jax.random.uniform(keys[3], (T, B)) > 0.5         # bool mask, as in torch

    bound = 1.0 / math.sqrt(H)    # torch RNNCell/LSTMCell init: U(-1/sqrt(H), 1/sqrt(H))
    w_ih_r = jax.random.uniform(keys[4], (H, H), jnp.float32, -bound, bound)
    w_hh_r = jax.random.uniform(keys[5], (H, H), jnp.float32, -bound, bound)
    b_ih_r = jax.random.uniform(keys[6], (H,), jnp.float32, -bound, bound)
    b_hh_r = jax.random.uniform(keys[7], (H,), jnp.float32, -bound, bound)

    w_ih_l = jax.random.uniform(keys[8], (4 * H, H), jnp.float32, -bound, bound)
    w_hh_l = jax.random.uniform(keys[9], (4 * H, H), jnp.float32, -bound, bound)
    b_ih_l = jax.random.uniform(keys[10], (4 * H,), jnp.float32, -bound, bound)
    b_hh_l = jax.random.uniform(keys[11], (4 * H,), jnp.float32, -bound, bound)

    # Hoisted once-per-model prep (transpose + concat + bias sum + bf16 cast).
    rnn_params = prepare_rnn_params(w_ih_r, w_hh_r, b_ih_r, b_hh_r)
    lstm_params = prepare_lstm_params(w_ih_l, w_hh_l, b_ih_l, b_hh_l)

    # ---------------- single-step call (== module.forward) ----------------
    x0, m0 = xs[0], masks[0]

    ox, oh = duration_cell_v3_rnn(x0, h0, m0, rnn_params)
    jax.block_until_ready((ox, oh))
    bx, bh = _ref_rnn_step(x0, h0, m0, w_ih_r, w_hh_r, b_ih_r, b_hh_r, jnp.bfloat16)
    rx, rh = _ref_rnn_step(x0, h0, m0, w_ih_r, w_hh_r, b_ih_r, b_hh_r)
    _check("rnn step x (bf16-matched)", ox, bx, 2e-3)
    _check("rnn step h (bf16-matched)", oh, bh, 2e-3)
    _check("rnn step x (f32 ref)", ox, rx, 5e-2)   # loose: intentional bf16 matmul
    _check("rnn step h (f32 ref)", oh, rh, 5e-2)

    lx, lh, lc = duration_cell_v3_lstm(x0, h0, c0, m0, lstm_params)
    jax.block_until_ready((lx, lh, lc))
    px, ph, pc = _ref_lstm_step(x0, h0, c0, m0, w_ih_l, w_hh_l, b_ih_l, b_hh_l,
                                jnp.bfloat16)
    qx, qh, qc = _ref_lstm_step(x0, h0, c0, m0, w_ih_l, w_hh_l, b_ih_l, b_hh_l)
    _check("lstm step x (bf16-matched)", lx, px, 2e-3)
    _check("lstm step h (bf16-matched)", lh, ph, 2e-3)
    _check("lstm step c (bf16-matched)", lc, pc, 2e-3)
    _check("lstm step x (f32 ref)", lx, qx, 5e-2)
    _check("lstm step h (f32 ref)", lh, qh, 5e-2)
    _check("lstm step c (f32 ref)", lc, qc, 5e-2)

    # ------------- fused sequence: T steps in ONE pallas_call -------------
    sx, sh = duration_cell_v3_rnn_seq(xs, masks, h0, rnn_params)
    jax.block_until_ready((sx, sh))
    bsx, bsh = _ref_rnn_seq(xs, masks, h0, w_ih_r, w_hh_r, b_ih_r, b_hh_r, jnp.bfloat16)
    rsx, rsh = _ref_rnn_seq(xs, masks, h0, w_ih_r, w_hh_r, b_ih_r, b_hh_r)
    _check("rnn seq x (bf16-matched)", sx, bsx, 5e-3)
    _check("rnn seq h (bf16-matched)", sh, bsh, 5e-3)
    _check("rnn seq x (f32 ref)", sx, rsx, 1e-1)
    _check("rnn seq h (f32 ref)", sh, rsh, 1e-1)

    tx, th, tc = duration_cell_v3_lstm_seq(xs, masks, h0, c0, lstm_params)
    jax.block_until_ready((tx, th, tc))
    btx, bth, btc = _ref_lstm_seq(xs, masks, h0, c0, w_ih_l, w_hh_l, b_ih_l, b_hh_l,
                                  jnp.bfloat16)
    rtx, rth, rtc = _ref_lstm_seq(xs, masks, h0, c0, w_ih_l, w_hh_l, b_ih_l, b_hh_l)
    _check("lstm seq x (bf16-matched)", tx, btx, 5e-3)
    _check("lstm seq h (bf16-matched)", th, bth, 5e-3)
    _check("lstm seq c (bf16-matched)", tc, btc, 5e-3)
    _check("lstm seq x (f32 ref)", tx, rtx, 1e-1)
    _check("lstm seq h (f32 ref)", th, rth, 1e-1)
    _check("lstm seq c (f32 ref)", tc, rtc, 1e-1)

    print("KERNEL_OK")
</pallas_src>

<mosaic_0001>
module attributes {stable_mosaic.version = 11 : i64} {
  func.func @_rnn_seq_kernel(%arg0: i32, %arg1: memref<1x8x32xf32, #tpu.memory_space<vmem>>, %arg2: memref<1x8x1xf32, #tpu.memory_space<vmem>>, %arg3: memref<8x32xf32, #tpu.memory_space<vmem>>, %arg4: memref<64x32xbf16, #tpu.memory_space<vmem>>, %arg5: memref<1x32xf32, #tpu.memory_space<vmem>>, %arg6: memref<1x8x32xf32, #tpu.memory_space<vmem>>, %arg7: memref<8x32xf32, #tpu.memory_space<vmem>>, %arg8: memref<8x32xf32, #tpu.memory_space<vmem>>, %arg9: memref<8x64xf32, #tpu.memory_space<vmem>>) attributes {dimension_semantics = [#tpu.dimension_semantics<arbitrary>], iteration_bounds = array<i64: 1>, scalar_prefetch = 0 : i64, scratch_operands = 2 : i64, tpu.core_type = #tpu.core_type<tc>, window_params = [{transform_indices = @transform_0, window_bounds = array<i64: 1, 8, 32>}, {transform_indices = @transform_1, window_bounds = array<i64: 1, 8, 1>}, {pipeline_mode = #tpu.pipeline_mode<synchronous>, transform_indices = @transform_2, window_bounds = array<i64: 8, 32>}, {pipeline_mode = #tpu.pipeline_mode<synchronous>, transform_indices = @transform_3, window_bounds = array<i64: 64, 32>}, {pipeline_mode = #tpu.pipeline_mode<synchronous>, transform_indices = @transform_4, window_bounds = array<i64: 1, 32>}, {transform_indices = @transform_5, window_bounds = array<i64: 1, 8, 32>}, {pipeline_mode = #tpu.pipeline_mode<synchronous>, transform_indices = @transform_6, window_bounds = array<i64: 8, 32>}]} {
    %c0_i32 = arith.constant 0 : i32
    %0 = arith.cmpi eq, %arg0, %c0_i32 : i32
    %1 = arith.extui %0 : i1 to i32
    %c0_i32_0 = arith.constant 0 : i32
    %2 = arith.cmpi ne, %1, %c0_i32_0 : i32
    scf.if %2 {
      %c0_24 = arith.constant 0 : index
      %c0_25 = arith.constant 0 : index
      %33 = vector.load %arg3[%c0_24, %c0_25] : memref<8x32xf32, #tpu.memory_space<vmem>>, vector<8x32xf32>
      %c0_26 = arith.constant 0 : index
      %c0_27 = arith.constant 0 : index
      %34 = vector.load %arg8[%c0_26, %c0_27] : memref<8x32xf32, #tpu.memory_space<vmem>>, vector<8x32xf32>
      tpu.vector_store %arg8[%c0_26, %c0_27], %33 {strides = array<i32>} : memref<8x32xf32, #tpu.memory_space<vmem>>, vector<8x32xf32>,
    } else {
    }
    %c0 = arith.constant 0 : index
    %c0_1 = arith.constant 0 : index
    %c0_2 = arith.constant 0 : index
    %3 = vector.load %arg1[%c0, %c0_1, %c0_2] : memref<1x8x32xf32, #tpu.memory_space<vmem>>, vector<1x8x32xf32>
    %4 = vector.shape_cast %3 : vector<1x8x32xf32> to vector<8x32xf32>
    %c0_3 = arith.constant 0 : index
    %c0_4 = arith.constant 0 : index
    %5 = vector.load %arg8[%c0_3, %c0_4] : memref<8x32xf32, #tpu.memory_space<vmem>>, vector<8x32xf32>
    %c0_5 = arith.constant 0 : index
    %c0_6 = arith.constant 0 : index
    %c0_7 = arith.constant 0 : index
    %6 = vector.load %arg2[%c0_5, %c0_6, %c0_7] : memref<1x8x1xf32, #tpu.memory_space<vmem>>, vector<1x8x1xf32>
    %7 = vector.shape_cast %6 : vector<1x8x1xf32> to vector<8x1xf32>
    %c0_8 = arith.constant 0 : index
    %c0_9 = arith.constant 0 : index
    %8 = vector.load %arg9[%c0_8, %c0_9] : memref<8x64xf32, #tpu.memory_space<vmem>>, vector<8x32xf32>
    tpu.vector_store %arg9[%c0_8, %c0_9], %4 {strides = array<i32>} : memref<8x64xf32, #tpu.memory_space<vmem>>, vector<8x32xf32>,
    %c0_10 = arith.constant 0 : index
    %c32 = arith.constant 32 : index
    %9 = vector.load %arg9[%c0_10, %c32] : memref<8x64xf32, #tpu.memory_space<vmem>>, vector<8x32xf32>
    tpu.vector_store %arg9[%c0_10, %c32], %5 {strides = array<i32>} : memref<8x64xf32, #tpu.memory_space<vmem>>, vector<8x32xf32>,
    %c0_11 = arith.constant 0 : index
    %c0_12 = arith.constant 0 : index
    %10 = vector.load %arg9[%c0_11, %c0_12] : memref<8x64xf32, #tpu.memory_space<vmem>>, vector<8x64xf32>
    %11 = arith.truncf %10 : vector<8x64xf32> to vector<8x64xbf16>
    %c0_13 = arith.constant 0 : index
    %c0_14 = arith.constant 0 : index
    %12 = vector.load %arg4[%c0_13, %c0_14] : memref<64x32xbf16, #tpu.memory_space<vmem>>, vector<64x32xbf16>
    %cst = arith.constant dense<0.000000e+00> : vector<8x32xf32>
    %13 = tpu.matmul %11, %12, %cst {dimension_numbers = #tpu.dot_dimension_numbers<[1], [0], [0], [1], [0, 0, 1, 1], [], []>} : vector<8x64xbf16>, vector<64x32xbf16>, vector<8x32xf32> -> vector<8x32xf32>
    %c0_15 = arith.constant 0 : index
    %c0_16 = arith.constant 0 : index
    %14 = vector.load %arg5[%c0_15, %c0_16] : memref<1x32xf32, #tpu.memory_space<vmem>>, vector<1x32xf32>
    %15 = vector.broadcast %14 : vector<1x32xf32> to vector<8x32xf32>
    %16 = arith.addf %13, %15 : vector<8x32xf32>
    %17 = math.tanh %16 : vector<8x32xf32>
    %18 = vector.shape_cast %7 : vector<8x1xf32> to vector<8x1xf32>
    %19 = vector.broadcast %18 : vector<8x1xf32> to vector<8x32xf32>
    %20 = arith.subf %17, %4 : vector<8x32xf32>
    %21 = arith.mulf %20, %19 : vector<8x32xf32>
    %22 = arith.addf %4, %21 : vector<8x32xf32>
    %c0_17 = arith.constant 0 : index
    %c0_18 = arith.constant 0 : index
    %c0_19 = arith.constant 0 : index
    %23 = vector.load %arg6[%c0_17, %c0_18, %c0_19] : memref<1x8x32xf32, #tpu.memory_space<vmem>>, vector<1x8x32xf32>
    %24 = vector.shape_cast %23 : vector<1x8x32xf32> to vector<8x32xf32>
    %25 = vector.shape_cast %22 : vector<8x32xf32> to vector<1x8x32xf32>
    tpu.vector_store %arg6[%c0_17, %c0_18, %c0_19], %25 {strides = array<i32>} : memref<1x8x32xf32, #tpu.memory_space<vmem>>, vector<1x8x32xf32>,
    %26 = arith.subf %17, %5 : vector<8x32xf32>
    %27 = arith.mulf %26, %19 : vector<8x32xf32>
    %28 = arith.addf %5, %27 : vector<8x32xf32>
    %c0_20 = arith.constant 0 : index
    %c0_21 = arith.constant 0 : index
    %29 = vector.load %arg8[%c0_20, %c0_21] : memref<8x32xf32, #tpu.memory_space<vmem>>, vector<8x32xf32>
    tpu.vector_store %arg8[%c0_20, %c0_21], %28 {strides = array<i32>} : memref<8x32xf32, #tpu.memory_space<vmem>>, vector<8x32xf32>,
    %c0_i32_22 = arith.constant 0 : i32
    %30 = arith.cmpi eq, %arg0, %c0_i32_22 : i32
    %31 = arith.extui %30 : i1 to i32
    %c0_i32_23 = arith.constant 0 : i32
    %32 = arith.cmpi ne, %31, %c0_i32_23 : i32
    scf.if %32 {
      %c0_24 = arith.constant 0 : index
      %c0_25 = arith.constant 0 : index
      %33 = vector.load %arg8[%c0_24, %c0_25] : memref<8x32xf32, #tpu.memory_space<vmem>>, vector<8x32xf32>
      %c0_26 = arith.constant 0 : index
      %c0_27 = arith.constant 0 : index
      %34 = vector.load %arg7[%c0_26, %c0_27] : memref<8x32xf32, #tpu.memory_space<vmem>>, vector<8x32xf32>
      tpu.vector_store %arg7[%c0_26, %c0_27], %33 {strides = array<i32>} : memref<8x32xf32, #tpu.memory_space<vmem>>, vector<8x32xf32>,
    } else {
    }
    return
  }
  func.func @transform_0(%arg0: i32) -> (i32, i32, i32) {
    %c0_i32 = arith.constant 0 : i32
    %c0_i32_0 = arith.constant 0 : i32
    %c0_i32_1 = arith.constant 0 : i32
    return %arg0, %c0_i32, %c0_i32_0 : i32, i32, i32
  }
  func.func @transform_1(%arg0: i32) -> (i32, i32, i32) {
    %c0_i32 = arith.constant 0 : i32
    %c0_i32_0 = arith.constant 0 : i32
    %c0_i32_1 = arith.constant 0 : i32
    return %arg0, %c0_i32, %c0_i32_0 : i32, i32, i32
  }
  func.func @transform_2(%arg0: i32) -> (i32, i32) {
    %c0_i32 = arith.constant 0 : i32
    %c0_i32_0 = arith.constant 0 : i32
    %c0_i32_1 = arith.constant 0 : i32
    return %c0_i32, %c0_i32_0 : i32, i32
  }
  func.func @transform_3(%arg0: i32) -> (i32, i32) {
    %c0_i32 = arith.constant 0 : i32
    %c0_i32_0 = arith.constant 0 : i32
    %c0_i32_1 = arith.constant 0 : i32
    return %c0_i32, %c0_i32_0 : i32, i32
  }
  func.func @transform_4(%arg0: i32) -> (i32, i32) {
    %c0_i32 = arith.constant 0 : i32
    %c0_i32_0 = arith.constant 0 : i32
    %c0_i32_1 = arith.constant 0 : i32
    return %c0_i32, %c0_i32_0 : i32, i32
  }
  func.func @transform_5(%arg0: i32) -> (i32, i32, i32) {
    %c0_i32 = arith.constant 0 : i32
    %c0_i32_0 = arith.constant 0 : i32
    %c0_i32_1 = arith.constant 0 : i32
    return %arg0, %c0_i32, %c0_i32_0 : i32, i32, i32
  }
  func.func @transform_6(%arg0: i32) -> (i32, i32) {
    %c0_i32 = arith.constant 0 : i32
    %c0_i32_0 = arith.constant 0 : i32
    %c0_i32_1 = arith.constant 0 : i32
    return %c0_i32, %c0_i32_0 : i32, i32
  }
}

</mosaic_0001>

<llo_original>
// kernel: duration_cell_v3_rnn_seq.1
$region0: #{duration_cell_v3_rnn_seq.1}
  #allocation0 [shape = 'u32[]', space=smem, size = 0x4, offset = 0x4, fixed_abs, tag = 'smem constant byte address 0x4 - core index']
  #allocation1 [shape = 'u32[72,128]{1,0:T(1,128)}', space=vmem, size = 0x9000, scoped, tag = 'internal scratch']
  #allocation2 [shape = 'f32[8,32]{1,0:T(8,128)}', space=vmem, size = 0x1000, scoped, tag = 'scratch operand']
  #allocation3 [shape = 'f32[8,64]{1,0:T(8,128)}', space=vmem, size = 0x1000, scoped, tag = 'scratch operand']
  %s0 = inlined_call_operand.vmem [shape: f32[1,8,32], index: 0, kind: input, shape index: {}]
  %s1 = inlined_call_operand.vmem [shape: f32[1,8,1], index: 1, kind: input, shape index: {}]
  %s2 = inlined_call_operand.vmem [shape: f32[8,32], index: 2, kind: input, shape index: {}]
  %s3 = inlined_call_operand.vmem [shape: bf16[64,32], index: 3, kind: input, shape index: {}]
  %s4 = inlined_call_operand.vmem [shape: f32[1,32], index: 4, kind: input, shape index: {}]
  %s5 = inlined_call_operand.hbm [shape: f32[1,8,32], index: 5, kind: output, shape index: {0}]
  %s6 = inlined_call_operand.hbm [shape: f32[8,32], index: 6, kind: output, shape index: {1}]
  %7 = xla_tuple %s5, %s6
  %s8 = sld [smem:[#allocation0]]
  $region46: #{duration_cell_v3_rnn_seq.1} parent=0
    _
  %s10 = ssub.s32 1, %s8
  %s11 = scalar_select 0, %s10, %s8
  $region1: #{duration_cell_v3_rnn_seq.1} parent=0
    #allocation4 [shape = 'u8[4096]{0}', space=vmem, size = 0x1000, scoped, tag = 'output window, operand 0, single buffered']
    #allocation5 [shape = 's32[1]{0}', space=sflag, size = 0x4, scoped, tag = 'scoped memory for duration_cell_v3_rnn_seq.1']
    #allocation6 [shape = 'u8[4096]{0}', space=vmem, size = 0x1000, scoped, tag = 'output window, operand 1, single buffered']
    #allocation7 [shape = 's32[1]{0}', space=sflag, size = 0x4, scoped, tag = 'scoped memory for duration_cell_v3_rnn_seq.1']
    %12 = vsyncpa [#allocation5], 0
    %13 = vsyncpa [#allocation7], 0
    // Predicated region
    $region2: #{duration_cell_v3_rnn_seq.1} parent=1 // pred_check
      _
    $region3: #{duration_cell_v3_rnn_seq.1} parent=1 // pred_check_branch
      %15 = sbr.rel (0) target = $region5
    $region4: #{duration_cell_v3_rnn_seq.1} parent=1 // pred_region
      _
    $region5: #{duration_cell_v3_rnn_seq.1} parent=1 // pred_fallthru
      _
    // Predicated region
    $region6: #{duration_cell_v3_rnn_seq.1} parent=1 // pred_check
      _
    $region7: #{duration_cell_v3_rnn_seq.1} parent=1 // pred_check_branch
      %17 = sbr.rel (0) target = $region9
    $region8: #{duration_cell_v3_rnn_seq.1} parent=1 // pred_region
      _
    $region9: #{duration_cell_v3_rnn_seq.1} parent=1 // pred_fallthru
      _
    // Predicated region
    $region10: #{duration_cell_v3_rnn_seq.1} parent=1 // pred_check
      _
    $region11: #{duration_cell_v3_rnn_seq.1} parent=1 // pred_check_branch
      %19 = sbr.rel (0) target = $region13
    $region12: #{duration_cell_v3_rnn_seq.1} parent=1 // pred_region
      _
    $region13: #{duration_cell_v3_rnn_seq.1} parent=1 // pred_fallthru
      _
    // Predicated region
    $region14: #{duration_cell_v3_rnn_seq.1} parent=1 // pred_check
      _
    $region15: #{duration_cell_v3_rnn_seq.1} parent=1 // pred_check_branch
      %21 = sbr.rel (0) target = $region17
    $region16: #{duration_cell_v3_rnn_seq.1} parent=1 // pred_region
      _
    $region17: #{duration_cell_v3_rnn_seq.1} parent=1 // pred_fallthru
      _
    // Predicated region
    $region18: #{duration_cell_v3_rnn_seq.1} parent=1 // pred_check
      _
    $region19: #{duration_cell_v3_rnn_seq.1} parent=1 // pred_check_branch
      %23 = sbr.rel (0) target = $region21
    $region20: #{duration_cell_v3_rnn_seq.1} parent=1 // pred_region
      _
    $region21: #{duration_cell_v3_rnn_seq.1} parent=1 // pred_fallthru
      _
    %p25 = scmp.eq.s32.totalorder 0, 0
    // Predicated region
    $region22: #{duration_cell_v3_rnn_seq.1} parent=1 // pred_check
      %p26 = pneg %p25
    $region23: #{duration_cell_v3_rnn_seq.1} parent=1 // pred_check_branch
      %28 = sbr.rel (%p26) target = $region25
    $region24: #{duration_cell_v3_rnn_seq.1} parent=1 // pred_region
      %v29 = vld [vmem:[%s2] sm:$0xff]
      %vm30 = vcmask 261120
      %31 = vst.msk [vmem:[#allocation2] sm:$0xff] %vm30, %v29
    $region25: #{duration_cell_v3_rnn_seq.1} parent=1 // pred_fallthru
      _
    %v32 = vld [vmem:[%s0] sm:$0xff]
    %v33 = vld [vmem:[#allocation2] sm:$0xff]
    %v34 = vld [vmem:[%s1] sm:$0xff]
    %vm35 = vcmask 261120
    %36 = vst.msk [vmem:[#allocation3] sm:$0xff] %vm35, %v32
    %38 = vrot.lane.b32.xlu0 %v33, 32
    %v39 = vpop.permute.xlu0 %38
    %vm41 = vcmask 523520
    %42 = vst.msk [vmem:[#allocation3] sm:$0xff] %vm41, %v39
    %v43 = vld [vmem:[#allocation3] sm:$0xff]
    %v44 = vpack.c.bf16 %v43, %v43
    %v45 = vld [vmem:[%s3] sm:$0xf]
    %v46 = vld [vmem:[%s3 + $0x4] sm:$0xf]
    %v47 = vld [vmem:[%s3 + $0x8] sm:$0xf]
    %v48 = vld [vmem:[%s3 + $0xc] sm:$0xf]
    %v49 = vld [vmem:[%s3 + $0x10] sm:$0xf]
    %v50 = vld [vmem:[%s3 + $0x14] sm:$0xf]
    %v51 = vld [vmem:[%s3 + $0x18] sm:$0xf]
    %v52 = vld [vmem:[%s3 + $0x1c] sm:$0xf]
    %v53 = vld [vmem:[%s4] sm:$0x1]
    %v55 = vperm.slane %v53, 0
    %v65 = vunpack.c.l.b16 %v45
    %v66 = vunpack.c.l.b16 %v46
    %v67 = vunpack.c.l.b16 %v47
    %v68 = vunpack.c.l.b16 %v48
    %v69 = vunpack.c.l.b16 %v49
    %v70 = vunpack.c.l.b16 %v50
    %v71 = vunpack.c.l.b16 %v51
    %v72 = vunpack.c.l.b16 %v52
    %v73 = vpack.c.b16 %v66, %v65
    %v74 = vpack.c.b16 %v68, %v67
    %v75 = vpack.c.b16 %v70, %v69
    %v76 = vpack.c.b16 %v72, %v71
    %vm81 = vcmask 523264
    %v83 = vsel %vm81, %v44, 0
    %85 = vmatpush.bf16.msra.mxu0 0
    %86 = vmatpush.bf16.msra.mxu0 0
    %87 = vmatpush.bf16.msra.mxu0 0
    %88 = vmatpush.bf16.msra.mxu0 0
    %89 = vmatpush.bf16.msra.mxu0 %v76
    %90 = vmatpush.bf16.msra.mxu0 %v75
    %91 = vmatpush.bf16.msra.mxu0 %v74
    %92 = vmatpush.bf16.msra.mxu0 %v73
    %93 = vmatmul.bf16.gmra.mxu0 %v83
    %v94 = vpop.f32.mrf.mxu0
    %v95 = vadd.f32 %v55, %v94
    %v96 = vpop.f32.mrf.mxu0
    %97 = vdwg.mxu0
    %v98 = vtanh.pop %v95
    %100 = vset.pattern.permute.xlu0 0
    %101 = vperm.xlu0 %100, %v34
    %v102 = vpop.permute.xlu0 %101
    %v104 = vsub.f32 %v98, %v32
    %v105 = vmul.f32 %v104, %v102
    %v106 = vadd.f32 %v32, %v105
    %107 = vst.msk [vmem:[#allocation4] sm:$0xff] %vm35, %v106
    %v108 = vsub.f32 %v98, %v33
    %v109 = vmul.f32 %v108, %v102
    %v110 = vadd.f32 %v33, %v109
    %111 = vst.msk [vmem:[#allocation2] sm:$0xff] %vm35, %v110
    // Predicated region
    $region26: #{duration_cell_v3_rnn_seq.1} parent=1 // pred_check
      %p112 = pneg %p25
    $region27: #{duration_cell_v3_rnn_seq.1} parent=1 // pred_check_branch
      %114 = sbr.rel (%p112) target = $region29
    $region28: #{duration_cell_v3_rnn_seq.1} parent=1 // pred_region
      %v115 = vld [vmem:[#allocation2] sm:$0xff]
      %116 = vst.msk [vmem:[#allocation6] sm:$0xff] %vm35, %v115
    $region29: #{duration_cell_v3_rnn_seq.1} parent=1 // pred_fallthru
      _
    // Predicated region
    $region30: #{duration_cell_v3_rnn_seq.1} parent=1 // pred_check
      _
    $region31: #{duration_cell_v3_rnn_seq.1} parent=1 // pred_check_branch
      %118 = sbr.rel (0) target = $region33
    $region32: #{duration_cell_v3_rnn_seq.1} parent=1 // pred_region
      %120 = vsyncadd [#allocation5], 0
      %s122 = sshll.u32 [#allocation4], 4
      %s123 = int_to_ptr.vmem [resolvable:$true] %s122
      %s124 = sshll.u32 %s5, 4
      %s125 = int_to_ptr.hbm [resolvable:$true] %s124
      %127 = dma.vmem_to_hbm [thread:$0]  %s123, 128, %s125, [#allocation5]
    $region33: #{duration_cell_v3_rnn_seq.1} parent=1 // pred_fallthru
      _
    // Predicated region
    $region34: #{duration_cell_v3_rnn_seq.1} parent=1 // pred_check
      _
    $region35: #{duration_cell_v3_rnn_seq.1} parent=1 // pred_check_branch
      %129 = sbr.rel (0) target = $region37
    $region36: #{duration_cell_v3_rnn_seq.1} parent=1 // pred_region
      %131 = vsyncadd [#allocation7], 0
      %s133 = sshll.u32 [#allocation6], 4
      %s134 = int_to_ptr.vmem [resolvable:$true] %s133
      %s135 = sshll.u32 %s6, 4
      %s136 = int_to_ptr.hbm [resolvable:$true] %s135
      %138 = dma.vmem_to_hbm [thread:$0]  %s134, 128, %s136, [#allocation7]
    $region37: #{duration_cell_v3_rnn_seq.1} parent=1 // pred_fallthru
      _
    // Predicated region
    $region38: #{duration_cell_v3_rnn_seq.1} parent=1 // pred_check
      _
    $region39: #{duration_cell_v3_rnn_seq.1} parent=1 // pred_check_branch
      %140 = sbr.rel (0) target = $region41
    $region40: #{duration_cell_v3_rnn_seq.1} parent=1 // pred_region
      %142 = dma.done [#allocation5], 128
    $region41: #{duration_cell_v3_rnn_seq.1} parent=1 // pred_fallthru
      _
    // Predicated region
    $region42: #{duration_cell_v3_rnn_seq.1} parent=1 // pred_check
      _
    $region43: #{duration_cell_v3_rnn_seq.1} parent=1 // pred_check_branch
      %144 = sbr.rel (0) target = $region45
    $region44: #{duration_cell_v3_rnn_seq.1} parent=1 // pred_region
      %146 = dma.done [#allocation7], 128
    $region45: #{duration_cell_v3_rnn_seq.1} parent=1 // pred_fallthru
      _
    %147 = vsyncpa [#allocation5], 1
    %148 = vsyncpa [#allocation7], 1

</llo_original>
